<compile_context>
chip_gen: v7x
topology: tpu7x:2x2x1
jax: 0.10.0
libtpu: 0.0.40
codegen_flags: <defaults>
</compile_context>

<pallas_src>
import jax
import jax.numpy as jnp
from jax.experimental import pallas as pl
from jax.experimental.pallas import tpu as pltpu


def _round_up(x, m):
    return ((x + m - 1) // m) * m


# ----------------------------------------------------------------------------
# Single fused kernel: flow iterations + (folded) normalize + seg head + argmax
# ----------------------------------------------------------------------------
def _fused_kernel(x0_ref, x1_ref, slab1_ref, slab2_ref, flow_ref, pred_ref):
    # Cast at the load boundary so uint8 / bf16 frames are accepted too;
    # all in-kernel arithmetic stays f32 (v5e has no bf16 VPU/EUP path).
    x0 = x0_ref[0].astype(jnp.float32)           # (3, tm)
    x1 = x1_ref[0].astype(jnp.float32)           # (3, tm)
    tm = x0.shape[-1]
    h2 = slab1_ref.shape[0]                      # 2 * hidden

    # ---- stage 1: ONE MXU push.  slab1 = [Wa | Wb | Bh | 0]  (2h, 8).
    # ImageNet normalize and the 2/255-1 flow prescale are pre-folded into
    # Wa/Wb/Bh on the host; the bias rides the ones row of xcat.
    xcat = jnp.concatenate(
        [x0, x1,
         jnp.ones((1, tm), jnp.float32),
         jnp.zeros((1, tm), jnp.float32)], axis=0)               # (8, tm)
    y = jnp.maximum(
        jnp.dot(slab1_ref[...], xcat, preferred_element_type=jnp.float32),
        0.0)                                                     # (2h, tm)
    # y[:hidden] = ctx (flow branch), y[hidden:] = h (seg branch)

    # ---- stage 2: ONE MXU push of block-diag [wcdt 0; 0 w2t].
    slab2 = slab2_ref[...]                                       # (2+nc, 2h+3)
    z = jnp.dot(slab2[:, :h2], y, preferred_element_type=jnp.float32)
    z = z + slab2[:, h2:h2 + 1]                                  # + [bd; b2]
    base = z[0:2, :]                                             # (2, tm)
    logits = z[2:, :]                                            # (nc, tm)

    # ---- RAFT-style iterative flow refinement (stand-in update rule) ------
    # Constant (2,1)->(2,tm) broadcasts hoisted out of the loop (no CSE in JAX).
    wfd0_b = jnp.broadcast_to(slab2[0:2, h2 + 1:h2 + 2], (2, tm))
    wfd1_b = jnp.broadcast_to(slab2[0:2, h2 + 2:h2 + 3], (2, tm))
    iters = flow_ref.shape[0]
    flow = jnp.zeros_like(base)

    def _step(f):
        mix = wfd0_b * f[0:1, :] + wfd1_b * f[1:2, :]            # VPU only
        return f + jnp.tanh(base + mix)                          # tanh -> EUP

    if iters <= 8:                       # small static trip count: unroll
        for it in range(iters):
            flow = _step(flow)
            flow_ref[it, 0] = flow.astype(flow_ref.dtype)
    else:                                # realistic RAFT iters: bounded loop
        def _body(it, f):
            f = _step(f)
            flow_ref[pl.ds(it, 1)] = f.astype(flow_ref.dtype)[None, None]
            return f
        flow = jax.lax.fori_loop(0, iters, _body, flow)

    # ---- seg argmax: unrolled VPU compare/select chain (no XLU reductions).
    # softmax dropped (argmax-invariant); first index wins ties like torch.
    best_v = logits[0:1, :]
    best_i = jnp.zeros((1, tm), jnp.int32)
    for ci in range(1, logits.shape[0]):
        v = logits[ci:ci + 1, :]
        take = v > best_v
        best_v = jnp.where(take, v, best_v)
        best_i = jnp.where(take, jnp.int32(ci), best_i)
    pred_ref[0] = best_i


# ----------------------------------------------------------------------------
# Host-side packing: fold affines into weights, concat 16 tiny params -> 2 slabs
# ----------------------------------------------------------------------------
def _pack_params(params, c):
    f32 = jnp.float32
    hidden = params["w1a"].shape[0]
    nc_cls = params["w2t"].shape[0]

    # (x/255 - mean) / std  ==  x * col_scale + shift  -> folded into weights.
    mean = jnp.array([0.485, 0.456, 0.406], f32).reshape(c, 1)
    std = jnp.array([0.229, 0.224, 0.225], f32).reshape(c, 1)
    col_scale = (1.0 / (255.0 * std)).reshape(1, c)
    shift = -mean / std

    w1a = params["w1a"] * col_scale
    w1b = params["w1b"] * col_scale
    b1 = params["b1"] + (params["w1a"] + params["w1b"]) @ shift

    # flow branch prescale x*2/255 - 1 folded the same way.
    s = 2.0 / 255.0
    wca = params["wca"] * s
    wcb = params["wcb"] * s
    bc = params["bc"] - (params["wca"] + params["wcb"]) @ jnp.ones((c, 1), f32)

    wa = jnp.concatenate([wca, w1a], axis=0)                 # (2h, 3)
    wb = jnp.concatenate([wcb, w1b], axis=0)                 # (2h, 3)
    bh = jnp.concatenate([bc, b1], axis=0)                   # (2h, 1)
    slab1 = jnp.concatenate(
        [wa, wb, bh, jnp.zeros((2 * hidden, 1), f32)], axis=1)   # (2h, 8)

    # block-diagonal stage-2 weight: [wcdt 0; 0 w2t]  (2+nc, 2h)
    w2 = jnp.zeros((2 + nc_cls, 2 * hidden), f32)
    w2 = w2.at[:2, :hidden].set(params["wcdt"])
    w2 = w2.at[2:, hidden:].set(params["w2t"])
    b2 = jnp.concatenate([params["bd"], params["b2"]], axis=0)   # (2+nc, 1)
    wfd = jnp.zeros((2 + nc_cls, 2), f32)
    wfd = wfd.at[:2, 0:1].set(params["wfd0"])
    wfd = wfd.at[:2, 1:2].set(params["wfd1"])
    slab2 = jnp.concatenate([w2, b2, wfd], axis=1)               # (2+nc, 2h+3)

    return slab1, slab2, hidden, nc_cls


# ----------------------------------------------------------------------------
# Inferencer.forward equivalent
# ----------------------------------------------------------------------------
def inferencer_forward(batch0, batch1, params, *, iters, tm=4096,
                       flow_dtype=jnp.float32):
    n, c, h, w = batch0.shape
    assert c == 3, "ImageNet normalization expects 3-channel frames"
    hw = h * w

    # Lane-axis tiling: tm rides the 128-wide lane axis; pad hw so no tail
    # pixels are silently dropped.  Sweep tm in 2048..8192 on real shapes,
    # keeping n * hw_p/tm >= 4 so both v7x TensorCores stay busy.
    tm = _round_up(min(tm, _round_up(hw, 128)), 128)
    hw_p = _round_up(hw, tm)

    # NCHW -> (N, C, H*W): free reshape, no transpose passes.
    x0 = batch0.reshape(n, c, hw)
    x1 = batch1.reshape(n, c, hw)
    if hw_p != hw:
        pad = ((0, 0), (0, 0), (0, hw_p - hw))
        x0 = jnp.pad(x0, pad)
        x1 = jnp.pad(x1, pad)

    slab1, slab2, hidden, nc_cls = _pack_params(params, c)

    # VMEM working-set estimate (double-buffered pipeline blocks + live
    # intermediates); comfortably under the 32 MiB scoped default at tm=4096
    # and iters<=32, and well inside v7x's 64 MiB physical VMEM.
    in_bytes = jnp.dtype(batch0.dtype).itemsize
    fl_bytes = jnp.dtype(flow_dtype).itemsize
    vmem_need = (2 * 2 * c * tm * in_bytes          # x0, x1 (double-buffered)
                 + 2 * iters * 2 * tm * fl_bytes    # flow out block
                 + 2 * tm * 4                       # pred out block
                 + (2 * hidden + 16) * tm * 4)      # xcat / y / z live values
    vmem_limit = int(min(48 << 20, max(32 << 20, 2 * vmem_need)))

    grid = (n, hw_p // tm)
    img_spec = pl.BlockSpec((1, c, tm), lambda b, i: (b, 0, i))

    flows, pred = pl.pallas_call(
        _fused_kernel,
        out_shape=(
            jax.ShapeDtypeStruct((iters, n, 2, hw_p), flow_dtype),
            jax.ShapeDtypeStruct((n, 1, hw_p), jnp.int32),
        ),
        grid=grid,
        in_specs=[
            img_spec, img_spec,                                   # x0, x1
            pl.BlockSpec(slab1.shape, lambda b, i: (0, 0)),       # slab1
            pl.BlockSpec(slab2.shape, lambda b, i: (0, 0)),       # slab2
        ],
        out_specs=(
            pl.BlockSpec((iters, 1, 2, tm), lambda b, i: (0, b, 0, i)),
            pl.BlockSpec((1, 1, tm), lambda b, i: (b, 0, i)),
        ),
        compiler_params=pltpu.CompilerParams(
            dimension_semantics=("parallel", "parallel"),
            vmem_limit_bytes=vmem_limit,
        ),
    )(x0, x1, slab1, slab2)

    flows = flows[..., :hw].reshape(iters, n, 2, h, w)
    flow_predictions = [flows[i] for i in range(iters)]       # list of (N,2,H,W)
    pred_valid = pred[:, 0, :hw].reshape(n, h, w)             # (N, H, W) int32
    return flow_predictions, pred_valid


def make_params(key, *, c_in=3, hidden=32, num_classes=4):
    ks = jax.random.split(key, 12)
    s = 0.1
    f32 = jnp.float32
    return {
        # FastSCNN stand-in, channel-major: h = relu(w1a@n0 + w1b@n1 + b1)
        "w1a": s * jax.random.normal(ks[0], (hidden, c_in), f32),
        "w1b": s * jax.random.normal(ks[1], (hidden, c_in), f32),
        "b1":  s * jax.random.normal(ks[2], (hidden, 1), f32),
        "w2t": s * jax.random.normal(ks[3], (num_classes, hidden), f32),
        "b2":  s * jax.random.normal(ks[4], (num_classes, 1), f32),
        # RAFT stand-in, channel-major
        "wca": s * jax.random.normal(ks[5], (hidden, c_in), f32),
        "wcb": s * jax.random.normal(ks[6], (hidden, c_in), f32),
        "bc":  s * jax.random.normal(ks[7], (hidden, 1), f32),
        "wcdt": s * jax.random.normal(ks[8], (2, hidden), f32),
        "bd":  s * jax.random.normal(ks[9], (2, 1), f32),
        "wfd0": s * jax.random.normal(ks[10], (2, 1), f32),
        "wfd1": s * jax.random.normal(ks[11], (2, 1), f32),
    }


if __name__ == "__main__":
    key = jax.random.PRNGKey(0)
    k0, k1, kp = jax.random.split(key, 3)

    N, C, H, W = 2, 3, 16, 16
    ITERS = 3
    NUM_CLASSES = 4

    # Raw images in [0, 255] (float32), NCHW like the PyTorch module.
    # (uint8 frames are also accepted by the kernel and quarter input HBM
    #  traffic; kept f32 here to mirror the module exactly.)
    batch0 = jax.random.uniform(k0, (N, C, H, W), jnp.float32, 0.0, 255.0)
    batch1 = jax.random.uniform(k1, (N, C, H, W), jnp.float32, 0.0, 255.0)
    params = make_params(kp, c_in=C, hidden=32, num_classes=NUM_CLASSES)

    flow_predictions, pred_valid = inferencer_forward(
        batch0, batch1, params, iters=ITERS)

    jax.block_until_ready(flow_predictions)
    jax.block_until_ready(pred_valid)

    assert len(flow_predictions) == ITERS
    assert flow_predictions[0].shape == (N, 2, H, W)
    assert pred_valid.shape == (N, H, W)
    assert pred_valid.dtype == jnp.int32
    assert all(f.dtype == jnp.float32 for f in flow_predictions)

    print("KERNEL_OK")
</pallas_src>

<mosaic_0001>
module attributes {stable_mosaic.version = 11 : i64} {
  func.func @_fused_kernel(%arg0: i32, %arg1: i32, %arg2: memref<1x3x256xf32, #tpu.memory_space<vmem>>, %arg3: memref<1x3x256xf32, #tpu.memory_space<vmem>>, %arg4: memref<64x8xf32, #tpu.memory_space<vmem>>, %arg5: memref<6x67xf32, #tpu.memory_space<vmem>>, %arg6: memref<3x1x2x256xf32, #tpu.memory_space<vmem>>, %arg7: memref<1x1x256xi32, #tpu.memory_space<vmem>>) attributes {dimension_semantics = [#tpu.dimension_semantics<parallel>, #tpu.dimension_semantics<parallel>], iteration_bounds = array<i64: 2, 1>, scalar_prefetch = 0 : i64, scratch_operands = 0 : i64, tpu.core_type = #tpu.core_type<tc>, window_params = [{transform_indices = @transform_0, window_bounds = array<i64: 1, 3, 256>}, {transform_indices = @transform_1, window_bounds = array<i64: 1, 3, 256>}, {pipeline_mode = #tpu.pipeline_mode<synchronous>, transform_indices = @transform_2, window_bounds = array<i64: 64, 8>}, {pipeline_mode = #tpu.pipeline_mode<synchronous>, transform_indices = @transform_3, window_bounds = array<i64: 6, 67>}, {transform_indices = @transform_4, window_bounds = array<i64: 3, 1, 2, 256>}, {transform_indices = @transform_5, window_bounds = array<i64: 1, 1, 256>}]} {
    %c0 = arith.constant 0 : index
    %c0_0 = arith.constant 0 : index
    %c0_1 = arith.constant 0 : index
    %0 = vector.load %arg2[%c0, %c0_0, %c0_1] : memref<1x3x256xf32, #tpu.memory_space<vmem>>, vector<1x3x256xf32>
    %1 = vector.shape_cast %0 : vector<1x3x256xf32> to vector<3x256xf32>
    %c0_2 = arith.constant 0 : index
    %c0_3 = arith.constant 0 : index
    %c0_4 = arith.constant 0 : index
    %2 = vector.load %arg3[%c0_2, %c0_3, %c0_4] : memref<1x3x256xf32, #tpu.memory_space<vmem>>, vector<1x3x256xf32>
    %3 = vector.shape_cast %2 : vector<1x3x256xf32> to vector<3x256xf32>
    %cst = arith.constant 1.000000e+00 : f32
    %4 = vector.broadcast %cst : f32 to vector<1x256xf32>
    %cst_5 = arith.constant 0.000000e+00 : f32
    %5 = vector.broadcast %cst_5 : f32 to vector<1x256xf32>
    %6 = tpu.concatenate %1, %3, %4, %5 in 0 : vector<3x256xf32>, vector<3x256xf32>, vector<1x256xf32>, vector<1x256xf32> -> vector<8x256xf32>
    %c0_6 = arith.constant 0 : index
    %c0_7 = arith.constant 0 : index
    %7 = vector.load %arg4[%c0_6, %c0_7] : memref<64x8xf32, #tpu.memory_space<vmem>>, vector<64x8xf32>
    %cst_8 = arith.constant dense<0.000000e+00> : vector<64x256xf32>
    %8 = tpu.matmul %7, %6, %cst_8 {dimension_numbers = #tpu.dot_dimension_numbers<[1], [0], [0], [1], [0, 0, 1, 1], [], []>} : vector<64x8xf32>, vector<8x256xf32>, vector<64x256xf32> -> vector<64x256xf32>
    %cst_9 = arith.constant 0.000000e+00 : f32
    %9 = vector.broadcast %cst_9 : f32 to vector<64x256xf32>
    %10 = arith.maximumf %8, %9 : vector<64x256xf32>
    %c0_10 = arith.constant 0 : index
    %c0_11 = arith.constant 0 : index
    %11 = vector.load %arg5[%c0_10, %c0_11] : memref<6x67xf32, #tpu.memory_space<vmem>>, vector<6x67xf32>
    %12 = vector.extract_strided_slice %11 {offsets = [0, 0], sizes = [6, 64], strides = [1, 1]} : vector<6x67xf32> to vector<6x64xf32>
    %cst_12 = arith.constant dense<0.000000e+00> : vector<6x256xf32>
    %13 = tpu.matmul %12, %10, %cst_12 {dimension_numbers = #tpu.dot_dimension_numbers<[1], [0], [0], [1], [0, 0, 1, 1], [], []>} : vector<6x64xf32>, vector<64x256xf32>, vector<6x256xf32> -> vector<6x256xf32>
    %14 = vector.extract_strided_slice %11 {offsets = [0, 64], sizes = [6, 1], strides = [1, 1]} : vector<6x67xf32> to vector<6x1xf32>
    %15 = vector.broadcast %14 : vector<6x1xf32> to vector<6x256xf32>
    %16 = arith.addf %13, %15 : vector<6x256xf32>
    %17 = vector.extract_strided_slice %16 {offsets = [0, 0], sizes = [2, 256], strides = [1, 1]} : vector<6x256xf32> to vector<2x256xf32>
    %18 = vector.extract_strided_slice %16 {offsets = [2, 0], sizes = [4, 256], strides = [1, 1]} : vector<6x256xf32> to vector<4x256xf32>
    %19 = vector.extract_strided_slice %11 {offsets = [0, 65], sizes = [2, 1], strides = [1, 1]} : vector<6x67xf32> to vector<2x1xf32>
    %20 = vector.shape_cast %19 : vector<2x1xf32> to vector<2x1xf32>
    %21 = vector.broadcast %20 : vector<2x1xf32> to vector<2x256xf32>
    %22 = vector.extract_strided_slice %11 {offsets = [0, 66], sizes = [2, 1], strides = [1, 1]} : vector<6x67xf32> to vector<2x1xf32>
    %23 = vector.shape_cast %22 : vector<2x1xf32> to vector<2x1xf32>
    %24 = vector.broadcast %23 : vector<2x1xf32> to vector<2x256xf32>
    %cst_13 = arith.constant 0.000000e+00 : f32
    %25 = vector.broadcast %cst_13 : f32 to vector<2x256xf32>
    %26 = vector.extract_strided_slice %25 {offsets = [0, 0], sizes = [1, 256], strides = [1, 1]} : vector<2x256xf32> to vector<1x256xf32>
    %27 = vector.broadcast %26 : vector<1x256xf32> to vector<2x256xf32>
    %28 = arith.mulf %21, %27 : vector<2x256xf32>
    %29 = vector.extract_strided_slice %25 {offsets = [1, 0], sizes = [1, 256], strides = [1, 1]} : vector<2x256xf32> to vector<1x256xf32>
    %30 = vector.broadcast %29 : vector<1x256xf32> to vector<2x256xf32>
    %31 = arith.mulf %24, %30 : vector<2x256xf32>
    %32 = arith.addf %28, %31 : vector<2x256xf32>
    %33 = arith.addf %17, %32 : vector<2x256xf32>
    %34 = math.tanh %33 : vector<2x256xf32>
    %35 = arith.addf %25, %34 : vector<2x256xf32>
    %c0_14 = arith.constant 0 : index
    %c0_15 = arith.constant 0 : index
    %c0_16 = arith.constant 0 : index
    %c0_17 = arith.constant 0 : index
    %36 = vector.load %arg6[%c0_14, %c0_15, %c0_16, %c0_17] : memref<3x1x2x256xf32, #tpu.memory_space<vmem>>, vector<1x1x2x256xf32>
    %37 = vector.shape_cast %36 : vector<1x1x2x256xf32> to vector<2x256xf32>
    %38 = vector.shape_cast %35 : vector<2x256xf32> to vector<1x1x2x256xf32>
    tpu.vector_store %arg6[%c0_14, %c0_15, %c0_16, %c0_17], %38 {strides = array<i32>} : memref<3x1x2x256xf32, #tpu.memory_space<vmem>>, vector<1x1x2x256xf32>,
    %39 = vector.extract_strided_slice %35 {offsets = [0, 0], sizes = [1, 256], strides = [1, 1]} : vector<2x256xf32> to vector<1x256xf32>
    %40 = vector.broadcast %39 : vector<1x256xf32> to vector<2x256xf32>
    %41 = arith.mulf %21, %40 : vector<2x256xf32>
    %42 = vector.extract_strided_slice %35 {offsets = [1, 0], sizes = [1, 256], strides = [1, 1]} : vector<2x256xf32> to vector<1x256xf32>
    %43 = vector.broadcast %42 : vector<1x256xf32> to vector<2x256xf32>
    %44 = arith.mulf %24, %43 : vector<2x256xf32>
    %45 = arith.addf %41, %44 : vector<2x256xf32>
    %46 = arith.addf %17, %45 : vector<2x256xf32>
    %47 = math.tanh %46 : vector<2x256xf32>
    %48 = arith.addf %35, %47 : vector<2x256xf32>
    %c1 = arith.constant 1 : index
    %c0_18 = arith.constant 0 : index
    %c0_19 = arith.constant 0 : index
    %c0_20 = arith.constant 0 : index
    %49 = vector.load %arg6[%c1, %c0_18, %c0_19, %c0_20] : memref<3x1x2x256xf32, #tpu.memory_space<vmem>>, vector<1x1x2x256xf32>
    %50 = vector.shape_cast %49 : vector<1x1x2x256xf32> to vector<2x256xf32>
    %51 = vector.shape_cast %48 : vector<2x256xf32> to vector<1x1x2x256xf32>
    tpu.vector_store %arg6[%c1, %c0_18, %c0_19, %c0_20], %51 {strides = array<i32>} : memref<3x1x2x256xf32, #tpu.memory_space<vmem>>, vector<1x1x2x256xf32>,
    %52 = vector.extract_strided_slice %48 {offsets = [0, 0], sizes = [1, 256], strides = [1, 1]} : vector<2x256xf32> to vector<1x256xf32>
    %53 = vector.broadcast %52 : vector<1x256xf32> to vector<2x256xf32>
    %54 = arith.mulf %21, %53 : vector<2x256xf32>
    %55 = vector.extract_strided_slice %48 {offsets = [1, 0], sizes = [1, 256], strides = [1, 1]} : vector<2x256xf32> to vector<1x256xf32>
    %56 = vector.broadcast %55 : vector<1x256xf32> to vector<2x256xf32>
    %57 = arith.mulf %24, %56 : vector<2x256xf32>
    %58 = arith.addf %54, %57 : vector<2x256xf32>
    %59 = arith.addf %17, %58 : vector<2x256xf32>
    %60 = math.tanh %59 : vector<2x256xf32>
    %61 = arith.addf %48, %60 : vector<2x256xf32>
    %c2 = arith.constant 2 : index
    %c0_21 = arith.constant 0 : index
    %c0_22 = arith.constant 0 : index
    %c0_23 = arith.constant 0 : index
    %62 = vector.load %arg6[%c2, %c0_21, %c0_22, %c0_23] : memref<3x1x2x256xf32, #tpu.memory_space<vmem>>, vector<1x1x2x256xf32>
    %63 = vector.shape_cast %62 : vector<1x1x2x256xf32> to vector<2x256xf32>
    %64 = vector.shape_cast %61 : vector<2x256xf32> to vector<1x1x2x256xf32>
    tpu.vector_store %arg6[%c2, %c0_21, %c0_22, %c0_23], %64 {strides = array<i32>} : memref<3x1x2x256xf32, #tpu.memory_space<vmem>>, vector<1x1x2x256xf32>,
    %65 = vector.extract_strided_slice %18 {offsets = [0, 0], sizes = [1, 256], strides = [1, 1]} : vector<4x256xf32> to vector<1x256xf32>
    %c0_i32 = arith.constant 0 : i32
    %66 = vector.broadcast %c0_i32 : i32 to vector<1x256xi32>
    %67 = vector.extract_strided_slice %18 {offsets = [1, 0], sizes = [1, 256], strides = [1, 1]} : vector<4x256xf32> to vector<1x256xf32>
    %68 = arith.cmpf ogt, %67, %65 : vector<1x256xf32>
    %69 = arith.select %68, %67, %65 : vector<1x256xi1>, vector<1x256xf32>
    %c1_i32 = arith.constant 1 : i32
    %70 = vector.broadcast %c1_i32 : i32 to vector<1x256xi32>
    %71 = arith.select %68, %70, %66 : vector<1x256xi1>, vector<1x256xi32>
    %72 = vector.extract_strided_slice %18 {offsets = [2, 0], sizes = [1, 256], strides = [1, 1]} : vector<4x256xf32> to vector<1x256xf32>
    %73 = arith.cmpf ogt, %72, %69 : vector<1x256xf32>
    %74 = arith.select %73, %72, %69 : vector<1x256xi1>, vector<1x256xf32>
    %c2_i32 = arith.constant 2 : i32
    %75 = vector.broadcast %c2_i32 : i32 to vector<1x256xi32>
    %76 = arith.select %73, %75, %71 : vector<1x256xi1>, vector<1x256xi32>
    %77 = vector.extract_strided_slice %18 {offsets = [3, 0], sizes = [1, 256], strides = [1, 1]} : vector<4x256xf32> to vector<1x256xf32>
    %78 = arith.cmpf ogt, %77, %74 : vector<1x256xf32>
    %c3_i32 = arith.constant 3 : i32
    %79 = vector.broadcast %c3_i32 : i32 to vector<1x256xi32>
    %80 = arith.select %78, %79, %76 : vector<1x256xi1>, vector<1x256xi32>
    %c0_24 = arith.constant 0 : index
    %c0_25 = arith.constant 0 : index
    %c0_26 = arith.constant 0 : index
    %81 = vector.load %arg7[%c0_24, %c0_25, %c0_26] : memref<1x1x256xi32, #tpu.memory_space<vmem>>, vector<1x1x256xi32>
    %82 = vector.shape_cast %81 : vector<1x1x256xi32> to vector<1x256xi32>
    %83 = vector.shape_cast %80 : vector<1x256xi32> to vector<1x1x256xi32>
    tpu.vector_store %arg7[%c0_24, %c0_25, %c0_26], %83 {strides = array<i32>} : memref<1x1x256xi32, #tpu.memory_space<vmem>>, vector<1x1x256xi32>,
    return
  }
  func.func @transform_0(%arg0: i32, %arg1: i32) -> (i32, i32, i32) {
    %c0_i32 = arith.constant 0 : i32
    %c0_i32_0 = arith.constant 0 : i32
    return %arg0, %c0_i32, %arg1 : i32, i32, i32
  }
  func.func @transform_1(%arg0: i32, %arg1: i32) -> (i32, i32, i32) {
    %c0_i32 = arith.constant 0 : i32
    %c0_i32_0 = arith.constant 0 : i32
    return %arg0, %c0_i32, %arg1 : i32, i32, i32
  }
  func.func @transform_2(%arg0: i32, %arg1: i32) -> (i32, i32) {
    %c0_i32 = arith.constant 0 : i32
    %c0_i32_0 = arith.constant 0 : i32
    %c0_i32_1 = arith.constant 0 : i32
    return %c0_i32, %c0_i32_0 : i32, i32
  }
  func.func @transform_3(%arg0: i32, %arg1: i32) -> (i32, i32) {
    %c0_i32 = arith.constant 0 : i32
    %c0_i32_0 = arith.constant 0 : i32
    %c0_i32_1 = arith.constant 0 : i32
    return %c0_i32, %c0_i32_0 : i32, i32
  }
  func.func @transform_4(%arg0: i32, %arg1: i32) -> (i32, i32, i32, i32) {
    %c0_i32 = arith.constant 0 : i32
    %c0_i32_0 = arith.constant 0 : i32
    %c0_i32_1 = arith.constant 0 : i32
    return %c0_i32, %arg0, %c0_i32_0, %arg1 : i32, i32, i32, i32
  }
  func.func @transform_5(%arg0: i32, %arg1: i32) -> (i32, i32, i32) {
    %c0_i32 = arith.constant 0 : i32
    %c0_i32_0 = arith.constant 0 : i32
    return %arg0, %c0_i32, %arg1 : i32, i32, i32
  }
}

</mosaic_0001>

<llo_original>
// kernel: tpu_custom_call.1
$region0: #{tpu_custom_call.1}
  #allocation0 [shape = 'u32[]', space=smem, size = 0x4, offset = 0x4, fixed_abs, tag = 'smem constant byte address 0x4 - core index']
  #allocation1 [shape = 'u32[144,128]{1,0:T(1,128)}', space=vmem, size = 0x12000, scoped, tag = 'internal scratch']
  %s0 = inlined_call_operand.vmem [shape: f32[2,3,256], index: 0, kind: input, shape index: {}]
  %s1 = inlined_call_operand.vmem [shape: f32[2,3,256], index: 1, kind: input, shape index: {}]
  %s2 = inlined_call_operand.vmem [shape: f32[64,8], index: 2, kind: input, shape index: {}]
  %s3 = inlined_call_operand.vmem [shape: f32[6,67], index: 3, kind: input, shape index: {}]
  %s4 = inlined_call_operand.hbm [shape: f32[3,2,2,256], index: 4, kind: output, shape index: {0}]
  %s5 = inlined_call_operand.hbm [shape: s32[2,1,256], index: 5, kind: output, shape index: {1}]
  %6 = xla_tuple %s4, %s5
  %s7 = sld [smem:[#allocation0]]
  $region57: #{tpu_custom_call.1} parent=0
    _
  %s9 = ssub.s32 1, %s7
  %s10 = scalar_select 0, %s9, %s7
  $region1: #{tpu_custom_call.1} parent=0
    #allocation2 [shape = 'u8[12288]{0}', space=vmem, size = 0x3000, scoped, tag = 'output window, operand 0']
    #allocation3 [shape = 's32[2]{0}', space=sflag, size = 0x8, scoped, tag = 'scoped memory for tpu_custom_call.1']
    #allocation4 [shape = 'u8[2048]{0}', space=vmem, size = 0x800, scoped, tag = 'output window, operand 1']
    #allocation5 [shape = 's32[2]{0}', space=sflag, size = 0x8, scoped, tag = 'scoped memory for tpu_custom_call.1']
    %11 = vsyncpa [#allocation3], 0
    %s12 = scalar_lea.sflag [#allocation3], 1
    %13 = vsyncpa %s12, 0
    %14 = vsyncpa [#allocation5], 0
    %s15 = scalar_lea.sflag [#allocation5], 1
    %16 = vsyncpa %s15, 0
    loop: start=0, step=1, limit=4
    $region2: #{tpu_custom_call.1} parent=1 // loop_pre_header
      _
    $region3: #{tpu_custom_call.1} parent=1 // loop_header
      %s18 = sphi 0, %s22
      %p19 = scmp.ge.s32.totalorder %s18, 4
      %s25 = sphi 0, %s37
      %s26 = sphi 0, %s33
      %s27 = sphi 0, %s25
      %s28 = sphi 0, %s26
      %s29 = sphi 0, %s27
      %s30 = sphi 0, %s28
      %s42 = sphi 0, %s44
      %s45 = sphi 0, %s42
      %s46 = sphi 0, %s45
      %s62 = sphi 0, %s46
      %s70 = sphi 0, %s72
      %s73 = sphi 0, %s70
      %s74 = sphi 0, %s73
      %s90 = sphi 0, %s74
      %s94 = sphi 0, %s94
      %s96 = sphi 0, %s94
      %s97 = sphi 0, %s96
      %s111 = sphi 0, %s97
      %s115 = sphi 0, %s115
      %s117 = sphi 0, %s115
      %s118 = sphi 0, %s117
      %s132 = sphi 0, %s118
      %s140 = sphi 0, %s142
      %s143 = sphi 0, %s140
      %s144 = sphi 0, %s143
      %s160 = sphi 0, %s144
      %s168 = sphi 0, %s170
      %s171 = sphi 0, %s168
      %s172 = sphi 0, %s171
      %s188 = sphi 0, %s172
    $region4: #{tpu_custom_call.1} parent=1 // loop_header_branch
      %21 = sbr.rel (%p19) target = $region8
    $region5: #{tpu_custom_call.1} parent=1 // loop_body
      %s23 = ssub.s32 %s18, 1
      %s24 = ssub.s32 %s18, 2
      %s31 = sadd.s32 1, %s26
      %p32 = scmp.ge.s32.totalorder %s31, 1
      %s33 = scalar_select %p32, 0, %s31
      %s34 = sadd.s32 1, %s25
      %s35 = scalar_select %p32, %s34, %s25
      %p36 = scmp.ge.s32.totalorder %s35, 2
      %s37 = scalar_select %p36, 0, %s35
      %s38 = ssub.s32 %s25, %s37
      %s39 = ssub.s32 %s26, %s33
      %s40 = sor.u32 %s38, %s39
      %p41 = scmp.eq.s32.totalorder %s40, 0
      %s43 = sadd.s32 %s42, 1
      %s44 = scalar_select %p41, %s42, %s43
      %p47 = pneg %p41
      %p48 = scmp.eq.s32.totalorder %s18, 1
      %p49 = por %p47, %p48
      %p50 = scmp.ne.s32.totalorder %s42, %s45
      %p51 = scmp.eq.s32.totalorder %s18, 0
      %p52 = por %p50, %p51
      %p53 = scmp.ne.s32.totalorder %s42, %s45
      %p54 = scmp.eq.s32.totalorder %s23, 1
      %p55 = por %p53, %p54
      %p56 = scmp.ne.s32.totalorder %s45, %s46
      %p57 = scmp.eq.s32.totalorder %s23, 0
      %p58 = por %p56, %p57
      %p59 = scmp.ne.s32.totalorder %s45, %s46
      %p60 = scmp.eq.s32.totalorder %s24, 1
      %p61 = por %p59, %p60
      %p63 = scmp.ne.s32.totalorder %s46, %s62
      %p64 = scmp.eq.s32.totalorder %s24, 0
      %p65 = por %p63, %p64
      %s66 = ssub.s32 %s25, %s37
      %s67 = ssub.s32 %s26, %s33
      %s68 = sor.u32 %s66, %s67
      %p69 = scmp.eq.s32.totalorder %s68, 0
      %s71 = sadd.s32 %s70, 1
      %s72 = scalar_select %p69, %s70, %s71
      %p75 = pneg %p69
      %p76 = scmp.eq.s32.totalorder %s18, 1
      %p77 = por %p75, %p76
      %p78 = scmp.ne.s32.totalorder %s70, %s73
      %p79 = scmp.eq.s32.totalorder %s18, 0
      %p80 = por %p78, %p79
      %p81 = scmp.ne.s32.totalorder %s70, %s73
      %p82 = scmp.eq.s32.totalorder %s23, 1
      %p83 = por %p81, %p82
      %p84 = scmp.ne.s32.totalorder %s73, %s74
      %p85 = scmp.eq.s32.totalorder %s23, 0
      %p86 = por %p84, %p85
      %p87 = scmp.ne.s32.totalorder %s73, %s74
      %p88 = scmp.eq.s32.totalorder %s24, 1
      %p89 = por %p87, %p88
      %p91 = scmp.ne.s32.totalorder %s74, %s90
      %p92 = scmp.eq.s32.totalorder %s24, 0
      %p93 = por %p91, %p92
      %s95 = sadd.s32 %s94, 1
      %p98 = scmp.eq.s32.totalorder %s18, 1
      %p99 = scmp.ne.s32.totalorder %s94, %s96
      %p100 = scmp.eq.s32.totalorder %s18, 0
      %p101 = por %p99, %p100
      %p102 = scmp.ne.s32.totalorder %s94, %s96
      %p103 = scmp.eq.s32.totalorder %s23, 1
      %p104 = por %p102, %p103
      %p105 = scmp.ne.s32.totalorder %s96, %s97
      %p106 = scmp.eq.s32.totalorder %s23, 0
      %p107 = por %p105, %p106
      %p108 = scmp.ne.s32.totalorder %s96, %s97
      %p109 = scmp.eq.s32.totalorder %s24, 1
      %p110 = por %p108, %p109
      %p112 = scmp.ne.s32.totalorder %s97, %s111
      %p113 = scmp.eq.s32.totalorder %s24, 0
      %p114 = por %p112, %p113
      %s116 = sadd.s32 %s115, 1
      %p119 = scmp.eq.s32.totalorder %s18, 1
      %p120 = scmp.ne.s32.totalorder %s115, %s117
      %p121 = scmp.eq.s32.totalorder %s18, 0
      %p122 = por %p120, %p121
      %p123 = scmp.ne.s32.totalorder %s115, %s117
      %p124 = scmp.eq.s32.totalorder %s23, 1
      %p125 = por %p123, %p124
      %p126 = scmp.ne.s32.totalorder %s117, %s118
      %p127 = scmp.eq.s32.totalorder %s23, 0
      %p128 = por %p126, %p127
      %p129 = scmp.ne.s32.totalorder %s117, %s118
      %p130 = scmp.eq.s32.totalorder %s24, 1
      %p131 = por %p129, %p130
      %p133 = scmp.ne.s32.totalorder %s118, %s132
      %p134 = scmp.eq.s32.totalorder %s24, 0
      %p135 = por %p133, %p134
      %s136 = ssub.s32 %s25, %s37
      %s137 = ssub.s32 %s26, %s33
      %s138 = sor.u32 %s136, %s137
      %p139 = scmp.eq.s32.totalorder %s138, 0
      %s141 = sadd.s32 %s140, 1
      %s142 = scalar_select %p139, %s140, %s141
      %p145 = pneg %p139
      %p146 = scmp.eq.s32.totalorder %s18, 1
      %p147 = por %p145, %p146
      %p148 = scmp.ne.s32.totalorder %s140, %s143
      %p149 = scmp.eq.s32.totalorder %s18, 0
      %p150 = por %p148, %p149
      %p151 = scmp.ne.s32.totalorder %s140, %s143
      %p152 = scmp.eq.s32.totalorder %s23, 1
      %p153 = por %p151, %p152
      %p154 = scmp.ne.s32.totalorder %s143, %s144
      %p155 = scmp.eq.s32.totalorder %s23, 0
      %p156 = por %p154, %p155
      %p157 = scmp.ne.s32.totalorder %s143, %s144
      %p158 = scmp.eq.s32.totalorder %s24, 1
      %p159 = por %p157, %p158
      %p161 = scmp.ne.s32.totalorder %s144, %s160
      %p162 = scmp.eq.s32.totalorder %s24, 0
      %p163 = por %p161, %p162
      %s164 = ssub.s32 %s25, %s37
      %s165 = ssub.s32 %s26, %s33
      %s166 = sor.u32 %s164, %s165
      %p167 = scmp.eq.s32.totalorder %s166, 0
      %s169 = sadd.s32 %s168, 1
      %s170 = scalar_select %p167, %s168, %s169
      %p173 = pneg %p167
      %p174 = scmp.eq.s32.totalorder %s18, 1
      %p175 = por %p173, %p174
      %p176 = scmp.ne.s32.totalorder %s168, %s171
      %p177 = scmp.eq.s32.totalorder %s18, 0
      %p178 = por %p176, %p177
      %p179 = scmp.ne.s32.totalorder %s168, %s171
      %p180 = scmp.eq.s32.totalorder %s23, 1
      %p181 = por %p179, %p180
      %p182 = scmp.ne.s32.totalorder %s171, %s172
      %p183 = scmp.eq.s32.totalorder %s23, 0
      %p184 = por %p182, %p183
      %p185 = scmp.ne.s32.totalorder %s171, %s172
      %p186 = scmp.eq.s32.totalorder %s24, 1
      %p187 = por %p185, %p186
      %p189 = scmp.ne.s32.totalorder %s172, %s188
      %p190 = scmp.eq.s32.totalorder %s24, 0
      %p191 = por %p189, %p190
      %p192 = scmp.le.s32.totalorder 1, %s18
      %p193 = scmp.lt.s32.totalorder %s18, 3
      %p194 = pnand %p192, %p193
      %p195 = pneg %p194
      // Predicated region
      $region9: #{tpu_custom_call.1} parent=5 // pred_check
        _
      $region10: #{tpu_custom_call.1} parent=5 // pred_check_branch
        %197 = sbr.rel (%p194) target = $region12
      $region11: #{tpu_custom_call.1} parent=5 // pred_region
        %s198 = ssub.s32 %s18, 1
        // Predicated region
        $region13: #{tpu_custom_call.1} parent=11 // pred_check
          %p199 = pneg %p107
        $region14: #{tpu_custom_call.1} parent=11 // pred_check_branch
          %201 = sbr.rel (%p199) target = $region16
        $region15: #{tpu_custom_call.1} parent=11 // pred_region
          _
        $region16: #{tpu_custom_call.1} parent=11 // pred_fallthru
          _
        // Predicated region
        $region17: #{tpu_custom_call.1} parent=11 // pred_check
          %p202 = pneg %p128
        $region18: #{tpu_custom_call.1} parent=11 // pred_check_branch
          %204 = sbr.rel (%p202) target = $region20
        $region19: #{tpu_custom_call.1} parent=11 // pred_region
          _
        $region20: #{tpu_custom_call.1} parent=11 // pred_fallthru
          _
      $region12: #{tpu_custom_call.1} parent=5 // pred_fallthru
        _
      %p205 = scmp.lt.s32.totalorder %s18, 2
      // Predicated region
      $region21: #{tpu_custom_call.1} parent=5 // pred_check
        %p206 = pneg %p205
      $region22: #{tpu_custom_call.1} parent=5 // pred_check_branch
        %208 = sbr.rel (%p206) target = $region24
      $region23: #{tpu_custom_call.1} parent=5 // pred_region
        // Predicated region
        $region25: #{tpu_custom_call.1} parent=23 // pred_check
          %p209 = pneg %p52
        $region26: #{tpu_custom_call.1} parent=23 // pred_check_branch
          %211 = sbr.rel (%p209) target = $region28
        $region27: #{tpu_custom_call.1} parent=23 // pred_region
          %s212 = smul.u32 2, %s26
          %p213 = scmp.lt.s32.totalorder %s25, 1
          %s214 = scalar_select %p213, %s25, 1
          %p215 = scmp.lt.s32.totalorder %s212, 1
          %s216 = scalar_select %p215, %s212, 1
          %s217 = smul.addr %s214, 2
          %s218 = sadd.s32 %s216, %s217
          %s219 = smul.addr %s218, 4
          %s220 = scalar_lea.vmem %s0, %s219
          %s221 = smul.u32 2, %s26
        $region28: #{tpu_custom_call.1} parent=23 // pred_fallthru
          _
        // Predicated region
        $region29: #{tpu_custom_call.1} parent=23 // pred_check
          %p222 = pneg %p80
        $region30: #{tpu_custom_call.1} parent=23 // pred_check_branch
          %224 = sbr.rel (%p222) target = $region32
        $region31: #{tpu_custom_call.1} parent=23 // pred_region
          %s225 = smul.u32 2, %s26
          %p226 = scmp.lt.s32.totalorder %s25, 1
          %s227 = scalar_select %p226, %s25, 1
          %p228 = scmp.lt.s32.totalorder %s225, 1
          %s229 = scalar_select %p228, %s225, 1
          %s230 = smul.addr %s227, 2
          %s231 = sadd.s32 %s229, %s230
          %s232 = smul.addr %s231, 4
          %s233 = scalar_lea.vmem %s1, %s232
          %s234 = smul.u32 2, %s26
        $region32: #{tpu_custom_call.1} parent=23 // pred_fallthru
          _
      $region24: #{tpu_custom_call.1} parent=5 // pred_fallthru
        _
      %p235 = scmp.le.s32.totalorder 1, %s18
      %p236 = scmp.lt.s32.totalorder %s18, 3
      %p237 = pnand %p235, %p236
      %p238 = pneg %p237
      // Predicated region
      $region33: #{tpu_custom_call.1} parent=5 // pred_check
        _
      $region34: #{tpu_custom_call.1} parent=5 // pred_check_branch
        %240 = sbr.rel (%p237) target = $region36
      $region35: #{tpu_custom_call.1} parent=5 // pred_region
        %s241 = ssub.s32 %s18, 1
        %s242 = smul.u32 2, %s28
        %p243 = scmp.lt.s32.totalorder %s27, 1
        %s244 = scalar_select %p243, %s27, 1
        %p245 = scmp.lt.s32.totalorder %s242, 1
        %s246 = scalar_select %p245, %s242, 1
        %s247 = smul.addr %s244, 2
        %s248 = sadd.s32 %s246, %s247
        %s249 = smul.addr %s248, 4
        %s250 = scalar_lea.vmem %s0, %s249
        %p251 = pneg %p58
        %p252 = pneg %p55
        %s253 = smul.u32 2, %s28
        %p254 = scmp.lt.s32.totalorder %s27, 1
        %s255 = scalar_select %p254, %s27, 1
        %p256 = scmp.lt.s32.totalorder %s253, 1
        %s257 = scalar_select %p256, %s253, 1
        %s258 = smul.addr %s255, 2
        %s259 = sadd.s32 %s257, %s258
        %s260 = smul.addr %s259, 4
        %s261 = scalar_lea.vmem %s1, %s260
        %p262 = pneg %p86
        %p263 = pneg %p83
        %p264 = pneg %p107
        %p265 = pneg %p104
        %p266 = pneg %p128
        %p267 = pneg %p125
        %p268 = pneg %p156
        %p269 = pneg %p153
        %s270 = sand.u32 %s143, 1
        %s271 = scalar_lea.sflag [#allocation3], %s270
        %s272 = sand.u32 %s143, 1
        %s273 = smul.addr %s272, 12
        %s274 = scalar_lea.vmem [#allocation2], %s273
        %p275 = pneg %p184
        %p276 = pneg %p181
        %s277 = sand.u32 %s171, 1
        %s278 = scalar_lea.sflag [#allocation5], %s277
        %s279 = sand.u32 %s171, 1
        %s280 = smul.addr %s279, 2
        %s281 = scalar_lea.vmem [#allocation4], %s280
        %s282 = smul.u32 2, %s28
        %p283 = scmp.lt.s32.totalorder %s27, 1
        %s284 = scalar_select %p283, %s27, 1
        %p285 = scmp.lt.s32.totalorder %s282, 1
        %s286 = scalar_select %p285, %s282, 1
        %s287 = smul.addr %s284, 2
        %s288 = sadd.s32 %s286, %s287
        %s289 = smul.addr %s288, 4
        %s290 = scalar_lea.vmem %s0, %s289
        %s291 = smul.u32 2, %s28
        %s292 = smul.u32 2, %s28
        %p293 = scmp.lt.s32.totalorder %s27, 1
        %s294 = scalar_select %p293, %s27, 1
        %p295 = scmp.lt.s32.totalorder %s292, 1
        %s296 = scalar_select %p295, %s292, 1
        %s297 = smul.addr %s294, 2
        %s298 = sadd.s32 %s296, %s297
        %s299 = smul.addr %s298, 4
        %s300 = scalar_lea.vmem %s1, %s299
        %s301 = smul.u32 2, %s28
        %s302 = smul.u32 2, %s28
        %s303 = smul.u32 2, %s28
        %v304 = vld [vmem:[%s290] sm:$0x77]
        %v305 = vld [vmem:[%s300] sm:$0x77]
        %v307 = vcombine.high %v304, %v304
        %v310 = vcombine.high %v305, %v305
        %v311 = vrot.slane %v305, 5
        %v312 = vrot.slane %v310, 5
        %vm315 = vcmask 1042432
        %v316 = vsel %vm315, %v304, %v311
        %v317 = vsel %vm315, %v307, %v312
        %vm318 = vcmask 1045504
        %v319 = vsel %vm318, %v316, 1.0
        %v320 = vsel %vm318, %v317, 1.0
        %vm321 = vcmask 1046528
        %v322 = vsel %vm321, %v319, 0.0
        %v323 = vsel %vm321, %v320, 0.0
        %v324 = vld [vmem:[%s2] sm:$0xff]
        %v325 = vld [vmem:[%s2 + $0x8] sm:$0xff]
        %v326 = vld [vmem:[%s2 + $0x10] sm:$0xff]
        %v327 = vld [vmem:[%s2 + $0x18] sm:$0xff]
        %v328 = vld [vmem:[%s2 + $0x20] sm:$0xff]
        %v329 = vld [vmem:[%s2 + $0x28] sm:$0xff]
        %v330 = vld [vmem:[%s2 + $0x30] sm:$0xff]
        %v331 = vld [vmem:[%s2 + $0x38] sm:$0xff]
        %vm332 = vcmask 64512
        %v334 = vsel %vm332, %v324, 0
        %v337 = vsel %vm332, %v325, 0
        %v340 = vsel %vm332, %v326, 0
        %v343 = vsel %vm332, %v327, 0
        %v346 = vsel %vm332, %v328, 0
        %v349 = vsel %vm332, %v329, 0
        %v352 = vsel %vm332, %v330, 0
        %v355 = vsel %vm332, %v331, 0
        %357 = vmatprep.subr.mxu0 %v323
        %358 = vmatpush1.msra.mxu0 %v322
        %359 = vmatprep.subr.mxu0 0.0
        %360 = vmatpush1.msra.mxu0 0.0
        %361 = vmatprep.subr.mxu0 0.0
        %362 = vmatpush1.msra.mxu0 0.0
        %363 = vmatprep.subr.mxu0 0.0
        %364 = vmatpush1.msra.mxu0 0.0
        %365 = vmatprep.subr.mxu0 0.0
        %366 = vmatpush1.msra.mxu0 0.0
        %367 = vmatprep.subr.mxu0 0.0
        %368 = vmatpush1.msra.mxu0 0.0
        %369 = vmatprep.subr.mxu0 0.0
        %370 = vmatpush1.msra.mxu0 0.0
        %371 = vmatprep.subr.mxu0 0.0
        %372 = vmatpush1.msra.mxu0 0.0
        %373 = vmatprep.subr.mxu0 0.0
        %374 = vmatpush1.msra.mxu0 0.0
        %375 = vmatprep.subr.mxu0 0.0
        %376 = vmatpush1.msra.mxu0 0.0
        %377 = vmatprep.subr.mxu0 0.0
        %378 = vmatpush1.msra.mxu0 0.0
        %379 = vmatprep.subr.mxu0 0.0
        %380 = vmatpush1.msra.mxu0 0.0
        %381 = vmatprep.subr.mxu0 0.0
        %382 = vmatpush1.msra.mxu0 0.0
        %383 = vmatprep.subr.mxu0 0.0
        %384 = vmatpush1.msra.mxu0 0.0
        %385 = vmatprep.subr.mxu0 0.0
        %386 = vmatpush1.msra.mxu0 0.0
        %387 = vmatprep.subr.mxu0 0.0
        %388 = vmatpush1.msra.mxu0 0.0
        %389 = vmatprep.subr.mxu0 0.0
        %390 = vmatpush1.msra.mxu0 0.0
        %391 = vmatprep.subr.mxu0 0.0
        %392 = vmatpush1.msra.mxu0 0.0
        %393 = vmatprep.subr.mxu0 0.0
        %394 = vmatpush1.msra.mxu0 0.0
        %395 = vmatprep.subr.mxu0 0.0
        %396 = vmatpush1.msra.mxu0 0.0
        %397 = vmatprep.subr.mxu0 0.0
        %398 = vmatpush1.msra.mxu0 0.0
        %399 = vmatprep.subr.mxu0 0.0
        %400 = vmatpush1.msra.mxu0 0.0
        %401 = vmatprep.subr.mxu0 0.0
        %402 = vmatpush1.msra.mxu0 0.0
        %403 = vmatprep.subr.mxu0 0.0
        %404 = vmatpush1.msra.mxu0 0.0
        %405 = vmatprep.subr.mxu0 0.0
        %406 = vmatpush1.msra.mxu0 0.0
        %407 = vmatprep.subr.mxu0 0.0
        %408 = vmatpush1.msra.mxu0 0.0
        %409 = vmatprep.subr.mxu0 0.0
        %410 = vmatpush1.msra.mxu0 0.0
        %411 = vmatprep.subr.mxu0 0.0
        %412 = vmatpush1.msra.mxu0 0.0
        %413 = vmatprep.subr.mxu0 0.0
        %414 = vmatpush1.msra.mxu0 0.0
        %415 = vmatprep.subr.mxu0 0.0
        %416 = vmatpush1.msra.mxu0 0.0
        %417 = vmatprep.subr.mxu0 0.0
        %418 = vmatpush1.msra.mxu0 0.0
        %419 = vmatprep.subr.mxu0 0.0
        %420 = vmatpush1.msra.mxu0 0.0
        %421 = vmatprep.mubr.f32.mxu0 0.0
        %422 = vmatmul.mubr.f32.gmra.mrb[0].mxu0 %v334
        %v423 = vpop.f32.mrb[0].mxu0
        %v424 = vadd.f32 0.0, %v423
        %v425 = vpop.f32.mrb[0].mxu0
        %v426 = vadd.f32 0.0, %v425
        %427 = vmatprep.mubr.f32.mxu0 0.0
        %428 = vmatmul.mubr.f32.gmra.mrb[0].mxu0 %v337
        %v429 = vpop.f32.mrb[0].mxu0
        %v430 = vadd.f32 0.0, %v429
        %v431 = vpop.f32.mrb[0].mxu0
        %v432 = vadd.f32 0.0, %v431
        %433 = vmatprep.mubr.f32.mxu0 0.0
        %434 = vmatmul.mubr.f32.gmra.mrb[0].mxu0 %v340
        %v435 = vpop.f32.mrb[0].mxu0
        %v436 = vadd.f32 0.0, %v435
        %v437 = vpop.f32.mrb[0].mxu0
        %v438 = vadd.f32 0.0, %v437
        %439 = vmatprep.mubr.f32.mxu0 0.0
        %440 = vmatmul.mubr.f32.gmra.mrb[0].mxu0 %v343
        %v441 = vpop.f32.mrb[0].mxu0
        %v442 = vadd.f32 0.0, %v441
        %v443 = vpop.f32.mrb[0].mxu0
        %v444 = vadd.f32 0.0, %v443
        %445 = vmatprep.mubr.f32.mxu0 0.0
        %446 = vmatmul.mubr.f32.gmra.mrb[0].mxu0 %v346
        %v447 = vpop.f32.mrb[0].mxu0
        %v448 = vadd.f32 0.0, %v447
        %v449 = vpop.f32.mrb[0].mxu0
        %v450 = vadd.f32 0.0, %v449
        %451 = vmatprep.mubr.f32.mxu0 0.0
        %452 = vmatmul.mubr.f32.gmra.mrb[0].mxu0 %v349
        %v453 = vpop.f32.mrb[0].mxu0
        %v454 = vadd.f32 0.0, %v453
        %v455 = vpop.f32.mrb[0].mxu0
        %v456 = vadd.f32 0.0, %v455
        %457 = vmatprep.mubr.f32.mxu0 0.0
        %458 = vmatmul.mubr.f32.gmra.mrb[0].mxu0 %v352
        %v459 = vpop.f32.mrb[0].mxu0
        %v460 = vadd.f32 0.0, %v459
        %v461 = vpop.f32.mrb[0].mxu0
        %v462 = vadd.f32 0.0, %v461
        %463 = vmatprep.mubr.f32.mxu0 0.0
        %464 = vmatmul.mubr.f32.gmra.mrb[0].mxu0 %v355
        %v465 = vpop.f32.mrb[0].mxu0
        %v466 = vadd.f32 0.0, %v465
        %v467 = vpop.f32.mrb[0].mxu0
        %v468 = vadd.f32 0.0, %v467
        %469 = vdwg.mxu0
        %v470 = vmax.f32 %v424, 0.0
        %v471 = vmax.f32 %v426, 0.0
        %v472 = vmax.f32 %v430, 0.0
        %v473 = vmax.f32 %v432, 0.0
        %v474 = vmax.f32 %v436, 0.0
        %v475 = vmax.f32 %v438, 0.0
        %v476 = vmax.f32 %v442, 0.0
        %v477 = vmax.f32 %v444, 0.0
        %v478 = vmax.f32 %v448, 0.0
        %v479 = vmax.f32 %v450, 0.0
        %v480 = vmax.f32 %v454, 0.0
        %v481 = vmax.f32 %v456, 0.0
        %v482 = vmax.f32 %v460, 0.0
        %v483 = vmax.f32 %v462, 0.0
        %v484 = vmax.f32 %v466, 0.0
        %v485 = vmax.f32 %v468, 0.0
        %v486 = vld [vmem:[%s3] sm:$0x3f]
        %488 = vset.pattern.permute.xlu0 64
        %489 = vperm.xlu0 %488, %v486
        %v490 = vpop.permute.xlu0 %489
        %vm492 = vcmask 523264
        %v493 = vsel %vm492, %v486, 0
        %495 = vmatprep.subr.mxu0 %v471
        %496 = vmatpush1.msra.mxu0 %v470
        %497 = vmatprep.subr.mxu0 %v473
        %498 = vmatpush1.msra.mxu0 %v472
        %499 = vmatprep.subr.mxu0 %v475
        %500 = vmatpush1.msra.mxu0 %v474
        %501 = vmatprep.subr.mxu0 %v477
        %502 = vmatpush1.msra.mxu0 %v476
        %503 = vmatprep.subr.mxu0 %v479
        %504 = vmatpush1.msra.mxu0 %v478
        %505 = vmatprep.subr.mxu0 %v481
        %506 = vmatpush1.msra.mxu0 %v480
        %507 = vmatprep.subr.mxu0 %v483
        %508 = vmatpush1.msra.mxu0 %v482
        %509 = vmatprep.subr.mxu0 %v485
        %510 = vmatpush1.msra.mxu0 %v484
        %511 = vmatprep.subr.mxu0 0.0
        %512 = vmatpush1.msra.mxu0 0.0
        %513 = vmatprep.subr.mxu0 0.0
        %514 = vmatpush1.msra.mxu0 0.0
        %515 = vmatprep.subr.mxu0 0.0
        %516 = vmatpush1.msra.mxu0 0.0
        %517 = vmatprep.subr.mxu0 0.0
        %518 = vmatpush1.msra.mxu0 0.0
        %519 = vmatprep.subr.mxu0 0.0
        %520 = vmatpush1.msra.mxu0 0.0
        %521 = vmatprep.subr.mxu0 0.0
        %522 = vmatpush1.msra.mxu0 0.0
        %523 = vmatprep.subr.mxu0 0.0
        %524 = vmatpush1.msra.mxu0 0.0
        %525 = vmatprep.subr.mxu0 0.0
        %526 = vmatpush1.msra.mxu0 0.0
        %527 = vmatprep.subr.mxu0 0.0
        %528 = vmatpush1.msra.mxu0 0.0
        %529 = vmatprep.subr.mxu0 0.0
        %530 = vmatpush1.msra.mxu0 0.0
        %531 = vmatprep.subr.mxu0 0.0
        %532 = vmatpush1.msra.mxu0 0.0
        %533 = vmatprep.subr.mxu0 0.0
        %534 = vmatpush1.msra.mxu0 0.0
        %535 = vmatprep.subr.mxu0 0.0
        %536 = vmatpush1.msra.mxu0 0.0
        %537 = vmatprep.subr.mxu0 0.0
        %538 = vmatpush1.msra.mxu0 0.0
        %539 = vmatprep.subr.mxu0 0.0
        %540 = vmatpush1.msra.mxu0 0.0
        %541 = vmatprep.subr.mxu0 0.0
        %542 = vmatpush1.msra.mxu0 0.0
        %543 = vmatprep.subr.mxu0 0.0
        %544 = vmatpush1.msra.mxu0 0.0
        %545 = vmatprep.subr.mxu0 0.0
        %546 = vmatpush1.msra.mxu0 0.0
        %547 = vmatprep.subr.mxu0 0.0
        %548 = vmatpush1.msra.mxu0 0.0
        %549 = vmatprep.subr.mxu0 0.0
        %550 = vmatpush1.msra.mxu0 0.0
        %551 = vmatprep.subr.mxu0 0.0
        %552 = vmatpush1.msra.mxu0 0.0
        %553 = vmatprep.subr.mxu0 0.0
        %554 = vmatpush1.msra.mxu0 0.0
        %555 = vmatprep.subr.mxu0 0.0
        %556 = vmatpush1.msra.mxu0 0.0
        %557 = vmatprep.subr.mxu0 0.0
        %558 = vmatpush1.msra.mxu0 0.0
        %559 = vmatprep.mubr.f32.mxu0 0.0
        %560 = vmatmul.mubr.f32.gmra.mrb[0].mxu0 %v493
        %v561 = vpop.f32.mrb[0].mxu0
        %v562 = vadd.f32 %v490, %v561
        %v563 = vpop.f32.mrb[0].mxu0
        %v564 = vadd.f32 %v490, %v563
        %565 = vdwg.mxu0
        %566 = vset.pattern.permute.xlu0 65
        %567 = vperm.xlu0 %566, %v486
        %v568 = vpop.permute.xlu0 %567
        %570 = vset.pattern.permute.xlu0 66
        %571 = vperm.xlu0 %570, %v486
        %v572 = vpop.permute.xlu0 %571
        %v574 = vmul.f32 %v568, 0.0
        %v575 = vmul.f32 %v572, 0.0
        %v576 = vadd.f32 %v574, %v575
        %v577 = vadd.f32 %v562, %v576
        %v578 = vadd.f32 %v564, %v576
        %v579 = vtanh.pop %v577
        %v580 = vtanh.pop %v578
        %v581 = vadd.f32 %v579, 0.0
        %v582 = vadd.f32 %v580, 0.0
        %v585 = vcombine.low %v581, %v582
        %v587 = vunpack.c.l.s4 1983009808
        %v588 = vunpack.c.0.s8 %v587
        %v589 = vlaneseq
        %v590 = vshrl.u32 %v589, 7
        %v591 = vsub.s32 %v588, %v590
        %v592 = vrot.slane %v585, %v591
        %594 = vst [vmem:[%s274] sm:$0xf] %v592
        %v595 = vlaneseq
        %v596 = vshrl.u32 %v595, 7
        %v597 = vsub.s32 0, %v596
        %v598 = vrot.slane %v581, %v597
        %v599 = vlaneseq
        %v600 = vshrl.u32 %v599, 7
        %v601 = vsub.s32 0, %v600
        %v602 = vrot.slane %v582, %v601
        %v603 = vmul.f32 %v568, %v598
        %v604 = vmul.f32 %v568, %v602
        %v605 = vlaneseq
        %v606 = vshrl.u32 %v605, 7
        %v607 = vsub.s32 1, %v606
        %v608 = vrot.slane %v581, %v607
        %v609 = vlaneseq
        %v610 = vshrl.u32 %v609, 7
        %v611 = vsub.s32 1, %v610
        %v612 = vrot.slane %v582, %v611
        %v613 = vmul.f32 %v572, %v608
        %v614 = vmul.f32 %v572, %v612
        %v615 = vadd.f32 %v603, %v613
        %v616 = vadd.f32 %v604, %v614
        %v617 = vadd.f32 %v562, %v615
        %v618 = vadd.f32 %v564, %v616
        %v619 = vtanh.pop %v617
        %v620 = vtanh.pop %v618
        %v621 = vadd.f32 %v581, %v619
        %v622 = vadd.f32 %v582, %v620
        %v625 = vcombine.low %v621, %v622
        %v627 = vunpack.c.l.s4 1983009808
        %v628 = vunpack.c.0.s8 %v627
        %v629 = vlaneseq
        %v630 = vshrl.u32 %v629, 7
        %v631 = vsub.s32 %v628, %v630
        %v632 = vrot.slane %v625, %v631
        %s634 = scalar_lea.vmem %s274, 4 [#allocation2]
        %635 = vst [vmem:[%s634] sm:$0xf] %v632
        %v636 = vlaneseq
        %v637 = vshrl.u32 %v636, 7
        %v638 = vsub.s32 0, %v637
        %v639 = vrot.slane %v621, %v638
        %v640 = vlaneseq
        %v641 = vshrl.u32 %v640, 7
        %v642 = vsub.s32 0, %v641
        %v643 = vrot.slane %v622, %v642
        %v644 = vmul.f32 %v568, %v639
        %v645 = vmul.f32 %v568, %v643
        %v646 = vlaneseq
        %v647 = vshrl.u32 %v646, 7
        %v648 = vsub.s32 1, %v647
        %v649 = vrot.slane %v621, %v648
        %v650 = vlaneseq
        %v651 = vshrl.u32 %v650, 7
        %v652 = vsub.s32 1, %v651
        %v653 = vrot.slane %v622, %v652
        %v654 = vmul.f32 %v572, %v649
        %v655 = vmul.f32 %v572, %v653
        %v656 = vadd.f32 %v644, %v654
        %v657 = vadd.f32 %v645, %v655
        %v658 = vadd.f32 %v562, %v656
        %v659 = vadd.f32 %v564, %v657
        %v660 = vtanh.pop %v658
        %v661 = vtanh.pop %v659
        %v662 = vadd.f32 %v621, %v660
        %v663 = vadd.f32 %v622, %v661
        %v666 = vcombine.low %v662, %v663
        %v668 = vunpack.c.l.s4 1983009808
        %v669 = vunpack.c.0.s8 %v668
        %v670 = vlaneseq
        %v671 = vshrl.u32 %v670, 7
        %v672 = vsub.s32 %v669, %v671
        %v673 = vrot.slane %v666, %v672
        %s675 = scalar_lea.vmem %s274, 8 [#allocation2]
        %676 = vst [vmem:[%s675] sm:$0xf] %v673
        %v679 = vrot.slane %v562, 7
        %v680 = vrot.slane %v564, 7
        %vm683 = vcmp.gt.f32.partialorder %v562, %v679
        %vm684 = vcmp.gt.f32.partialorder %v564, %v680
        %v685 = vsel %vm683, %v562, %v679
        %v686 = vsel %vm684, %v564, %v680
        %v687 = vsel %vm683, 1, 0
        %v688 = vsel %vm684, 1, 0
        %v691 = vrot.slane %v685, 7
        %v692 = vrot.slane %v686, 7
        %vm695 = vcmp.gt.f32.partialorder %v562, %v691
        %vm696 = vcmp.gt.f32.partialorder %v564, %v692
        %v697 = vsel %vm695, %v562, %v691
        %v698 = vsel %vm696, %v564, %v692
        %v699 = vrot.slane %v687, 7
        %v700 = vrot.slane %v688, 7
        %v701 = vsel %vm695, 2, %v699
        %v702 = vsel %vm696, 2, %v700
        %v705 = vrot.slane %v697, 7
        %v706 = vrot.slane %v698, 7
        %vm709 = vcmp.gt.f32.partialorder %v562, %v705
        %vm710 = vcmp.gt.f32.partialorder %v564, %v706
        %v711 = vrot.slane %v701, 7
        %v712 = vrot.slane %v702, 7
        %v713 = vsel %vm709, 3, %v711
        %v714 = vsel %vm710, 3, %v712
        %v715 = vcombine.high %v713, %v714
        %v717 = vunpack.c.l.s4 1966171168
        %v718 = vunpack.c.0.s8 %v717
        %v719 = vlaneseq
        %v720 = vshrl.u32 %v719, 7
        %v721 = vsub.s32 %v718, %v720
        %v722 = vrot.slane %v715, %v721
        %v723 = vcombine.high %v722, %v722
        %v725 = vunpack.c.l.s4 1966171168
        %v726 = vunpack.c.0.s8 %v725
        %v727 = vlaneseq
        %v728 = vshrl.u32 %v727, 7
        %v729 = vsub.s32 %v726, %v728
        %v730 = vrot.slane %v723, %v729
        %v731 = vlaneseq
        %vm732 = vcmp.ge.s32.totalorder %v731, 0
        %vm733 = vcmp.lt.s32.totalorder %v731, 256
        %vm734 = vmand %vm732, %vm733
        %735 = vst.msk [vmem:[%s281] sm:$0x3] %vm734, %v730
        %s736 = sand.u32 %s143, 1
        %s737 = scalar_lea.sflag [#allocation3], %s736
        %s738 = sand.u32 %s143, 1
        %s739 = smul.addr %s738, 12
        %s740 = scalar_lea.vmem [#allocation2], %s739
        %s741 = sand.u32 %s171, 1
        %s742 = scalar_lea.sflag [#allocation5], %s741
        %s743 = sand.u32 %s171, 1
        %s744 = smul.addr %s743, 2
        %s745 = scalar_lea.vmem [#allocation4], %s744
        // Predicated region
        $region37: #{tpu_custom_call.1} parent=35 // pred_check
          %p746 = pneg %p153
        $region38: #{tpu_custom_call.1} parent=35 // pred_check_branch
          %748 = sbr.rel (%p746) target = $region40
        $region39: #{tpu_custom_call.1} parent=35 // pred_region
          %s749 = smul.u32 2, %s28
          %s751 = ssub.s32 192, 192
          %752 = vsyncadd %s737, %s751
          %s753 = smul.addr %s27, 2
          %s754 = sadd.s32 %s749, %s753
          %s755 = smul.addr %s754, 32
          %s756 = scalar_lea.hbm %s4, %s755
          %s757 = sshll.u32 %s740, 4
          %s758 = int_to_ptr.vmem [resolvable:$true] %s757
          %763 = dma.vmem_to_hbm [thread:$0]  %s758, 192, %s756, %s737, 64, 128, 4
        $region40: #{tpu_custom_call.1} parent=35 // pred_fallthru
          _
        // Predicated region
        $region41: #{tpu_custom_call.1} parent=35 // pred_check
          %p764 = pneg %p181
        $region42: #{tpu_custom_call.1} parent=35 // pred_check_branch
          %766 = sbr.rel (%p764) target = $region44
        $region43: #{tpu_custom_call.1} parent=35 // pred_region
          %s767 = smul.u32 2, %s28
          %s769 = ssub.s32 32, 32
          %770 = vsyncadd %s742, %s769
          %s771 = smul.addr %s27, 2
          %s772 = sadd.s32 %s767, %s771
          %s773 = smul.addr %s772, 16
          %s774 = scalar_lea.hbm %s5, %s773
          %s776 = sshll.u32 %s745, 4
          %s777 = int_to_ptr.vmem [resolvable:$true] %s776
          %779 = dma.vmem_to_hbm [thread:$0]  %s777, 32, %s774, %s742
        $region44: #{tpu_custom_call.1} parent=35 // pred_fallthru
          _
      $region36: #{tpu_custom_call.1} parent=5 // pred_fallthru
        _
      %p780 = scmp.le.s32.totalorder 2, %s18
      // Predicated region
      $region45: #{tpu_custom_call.1} parent=5 // pred_check
        %p781 = pneg %p780
      $region46: #{tpu_custom_call.1} parent=5 // pred_check_branch
        %783 = sbr.rel (%p781) target = $region48
      $region47: #{tpu_custom_call.1} parent=5 // pred_region
        %s784 = ssub.s32 %s18, 2
        // Predicated region
        $region49: #{tpu_custom_call.1} parent=47 // pred_check
          %p785 = pneg %p159
        $region50: #{tpu_custom_call.1} parent=47 // pred_check_branch
          %787 = sbr.rel (%p785) target = $region52
        $region51: #{tpu_custom_call.1} parent=47 // pred_region
          %s788 = sand.u32 %s144, 1
          %s789 = scalar_lea.sflag [#allocation3], %s788
          %s790 = sand.u32 %s144, 1
          %s791 = smul.addr %s790, 12
          %s792 = scalar_lea.vmem [#allocation2], %s791
          %793 = dma.done %s789, 192
        $region52: #{tpu_custom_call.1} parent=47 // pred_fallthru
          _
        // Predicated region
        $region53: #{tpu_custom_call.1} parent=47 // pred_check
          %p794 = pneg %p187
        $region54: #{tpu_custom_call.1} parent=47 // pred_check_branch
          %796 = sbr.rel (%p794) target = $region56
        $region55: #{tpu_custom_call.1} parent=47 // pred_region
          %s797 = sand.u32 %s172, 1
          %s798 = scalar_lea.sflag [#allocation5], %s797
          %s799 = sand.u32 %s172, 1
          %s800 = smul.addr %s799, 2
          %s801 = scalar_lea.vmem [#allocation4], %s800
          %802 = dma.done %s798, 32
        $region56: #{tpu_custom_call.1} parent=47 // pred_fallthru
          _
      $region48: #{tpu_custom_call.1} parent=5 // pred_fallthru
        _
    $region6: #{tpu_custom_call.1} parent=1 // loop_footer
      %s22 = sadd.s32 1, %s18
    $region7: #{tpu_custom_call.1} parent=1 // loop_footer_branch
      %17 = sbr.rel target = $region3
    $region8: #{tpu_custom_call.1} parent=1 // loop_exit
      _
    %803 = vsyncpa [#allocation3], 1
    %s804 = scalar_lea.sflag [#allocation3], 1
    %805 = vsyncpa %s804, 1
    %806 = vsyncpa [#allocation5], 1
    %s807 = scalar_lea.sflag [#allocation5], 1
    %808 = vsyncpa %s807, 1

</llo_original>
